<compile_context>
chip_gen: v6e
topology: v6e:2x2x1
jax: 0.10.0
libtpu: 0.0.40
codegen_flags: <defaults>
</compile_context>

<pallas_src>
import math

import numpy as np
import jax
import jax.numpy as jnp
from jax import lax
from jax.experimental import pallas as pl
from jax.experimental.pallas import tpu as pltpu

# ---------------- model dimensions (small, consistent with the module) -------
B = 2            # batch
S = 8            # sequence length
D_DATA = 16      # raw feature dim (input_embedding in_features)
D_MODEL = 32     # model dim
NUM_HEADS = 4
HEAD_DIM = D_MODEL // NUM_HEADS
FFN_HIDDEN = 64
EPS = 1e-5

N_ROWS = B * S                    # 16 : flattened (batch, seq) rows
N_STACK = B * NUM_HEADS * S       # 64 : flattened (batch, head, seq) rows
NEG_INF = -1e30

# ---------------- packed-parameter buffer layout (one DMA) -------------------
PACK_LANES = 128
ROW_WE = 0        # (16, 32)
ROW_VEC = 16      # 9 single-row vectors (be, bqkv, bl, g1, b1n, b1, b2, g2, b2n)
ROW_WQKV = 32     # (32, 96)   (Q columns pre-scaled by 1/sqrt(head_dim))
ROW_WL = 64       # (32, 32)
ROW_W1 = 96       # (32, 64)
ROW_W2 = 128      # (64, 32)
ROW_MASK = 192    # (64, 64)   additive block-diagonal softmax mask
PACK_ROWS = 256


# =============================== fused kernel ================================
def encoder_kernel(x_ref, p_ref, o_ref, qkv_st, vst):
    f32 = jnp.float32

    x = x_ref[...]                                                # (16, 16)

    # ---- static views into the single packed parameter buffer --------------
    we   = p_ref[ROW_WE:ROW_WE + D_DATA, 0:D_MODEL]               # (16, 32)
    wqkv = p_ref[ROW_WQKV:ROW_WQKV + D_MODEL, 0:3 * D_MODEL]      # (32, 96)
    wl   = p_ref[ROW_WL:ROW_WL + D_MODEL, 0:D_MODEL]              # (32, 32)
    w1   = p_ref[ROW_W1:ROW_W1 + D_MODEL, 0:FFN_HIDDEN]           # (32, 64)
    w2   = p_ref[ROW_W2:ROW_W2 + FFN_HIDDEN, 0:D_MODEL]           # (64, 32)
    mask = p_ref[ROW_MASK:ROW_MASK + N_STACK, 0:N_STACK]          # (64, 64)

    be   = p_ref[ROW_VEC + 0:ROW_VEC + 1, 0:D_MODEL]
    bqkv = p_ref[ROW_VEC + 1:ROW_VEC + 2, 0:3 * D_MODEL]
    bl   = p_ref[ROW_VEC + 2:ROW_VEC + 3, 0:D_MODEL]
    g1   = p_ref[ROW_VEC + 3:ROW_VEC + 4, 0:D_MODEL]
    b1n  = p_ref[ROW_VEC + 4:ROW_VEC + 5, 0:D_MODEL]
    b1   = p_ref[ROW_VEC + 5:ROW_VEC + 6, 0:FFN_HIDDEN]
    b2   = p_ref[ROW_VEC + 6:ROW_VEC + 7, 0:D_MODEL]
    g2   = p_ref[ROW_VEC + 7:ROW_VEC + 8, 0:D_MODEL]
    b2n  = p_ref[ROW_VEC + 8:ROW_VEC + 9, 0:D_MODEL]

    # ---- 1) input embedding (Linear d_data -> d_model) ---------------------
    emb = jnp.dot(x, we, preferred_element_type=f32) + be         # (16, 32)

    # ---- 2) fused QKV projection (score scale pre-folded into Q cols) ------
    qkv = jnp.dot(emb, wqkv, preferred_element_type=f32) + bqkv   # (16, 96)

    # ---- 3) restack into (batch, head, seq) order via VMEM scratch ---------
    # torch layout: per head h the 24 columns [h*24 : (h+1)*24] are [q|k|v].
    for b in range(B):
        for h in range(NUM_HEADS):
            r = (b * NUM_HEADS + h) * S
            qkv_st[r:r + S, :] = qkv[b * S:(b + 1) * S,
                                     h * 3 * HEAD_DIM:(h + 1) * 3 * HEAD_DIM]

    q_st = qkv_st[:, 0:HEAD_DIM]                                  # (64, 8)
    k_st = qkv_st[:, HEAD_DIM:2 * HEAD_DIM]                       # (64, 8)
    v_st = qkv_st[:, 2 * HEAD_DIM:3 * HEAD_DIM]                   # (64, 8)

    # ---- 4) all (batch, head) attention problems in ONE masked matmul ------
    scores = lax.dot_general(q_st, k_st, (((1,), (1,)), ((), ())),
                             preferred_element_type=f32) + mask   # (64, 64)
    m = jnp.max(scores, axis=-1, keepdims=True)
    e = jnp.exp(scores - m)
    denom = jnp.sum(e, axis=-1, keepdims=True)
    # approx=False keeps bit-level agreement with the reference softmax
    # (review: fall back to exact if approx=True breaks the 1e-4 check).
    attn = e * pl.reciprocal(denom, approx=False)
    vals_st = jnp.dot(attn, v_st, preferred_element_type=f32)     # (64, 8)

    # ---- 5) torch's quirky values.reshape(B, S, H*head_dim) ----------------
    # (B,H,S,hd) row-major == the (64,8) stack row-major, so the target
    # (B*S, H*hd) satisfies out[R, j*hd:(j+1)*hd] = vals_st[H*R + j]:
    # 4 sublane-strided views of a scratch copy, one lane concat.
    vst[...] = vals_st
    vals = jnp.concatenate(
        [vst[pl.ds(j, N_ROWS, stride=NUM_HEADS), :] for j in range(NUM_HEADS)],
        axis=1)                                                   # (16, 32)

    # ---- 6) output projection + residual + LayerNorm1 ----------------------
    def layernorm(z, gamma, beta):
        mu = jnp.mean(z, axis=-1, keepdims=True)
        zc = z - mu
        var = jnp.mean(zc * zc, axis=-1, keepdims=True)
        return gamma * (zc * lax.rsqrt(var + EPS)) + beta

    attn_out = jnp.dot(vals, wl, preferred_element_type=f32) + bl  # (16, 32)
    # dropout1: identity (inference)
    x1 = layernorm(attn_out + emb, g1, b1n)

    # ---- 7) FFN + residual + LayerNorm2 -------------------------------------
    hdn = jnp.maximum(jnp.dot(x1, w1, preferred_element_type=f32) + b1, 0.0)
    # ffn-internal dropout: identity (inference)
    ffn = jnp.dot(hdn, w2, preferred_element_type=f32) + b2        # (16, 32)

    # dropout2: identity (inference)
    o_ref[...] = layernorm(ffn + x1, g2, b2n)


# =============================== wrapper =====================================
_FLOPS = 2 * (16 * 16 * 32 + 16 * 32 * 96 + 64 * 8 * 64 + 64 * 64 * 8
              + 16 * 32 * 32 + 16 * 32 * 64 + 16 * 64 * 32)
_BYTES = N_ROWS * D_DATA * 4 + PACK_ROWS * PACK_LANES * 4 + N_ROWS * D_MODEL * 4


@jax.jit
def encoder_layer(x, packed):
    x2d = x.reshape(N_ROWS, D_DATA)            # free XLA reshape (lane-dense)
    out2d = pl.pallas_call(
        encoder_kernel,
        out_shape=jax.ShapeDtypeStruct((N_ROWS, D_MODEL), jnp.float32),
        in_specs=[pl.BlockSpec(memory_space=pltpu.MemorySpace.VMEM),
                  pl.BlockSpec(memory_space=pltpu.MemorySpace.VMEM)],
        out_specs=pl.BlockSpec(memory_space=pltpu.MemorySpace.VMEM),
        scratch_shapes=[pltpu.VMEM((N_STACK, 3 * HEAD_DIM), jnp.float32),
                        pltpu.VMEM((N_STACK, HEAD_DIM), jnp.float32)],
        cost_estimate=pl.CostEstimate(flops=_FLOPS,
                                      transcendentals=N_STACK * N_STACK,
                                      bytes_accessed=_BYTES),
        # No grid: single invocation, whole working set (<200 KiB) resident in
        # VMEM on every TPU generation (well under v7x's 64 MiB).
    )(x2d, packed)
    return out2d.reshape(B, S, D_MODEL)


# ===================== host-side parameter packing (one DMA) =================
def pack_params(p):
    buf = np.zeros((PACK_ROWS, PACK_LANES), np.float32)

    def put(row, arr):
        a = np.asarray(arr, np.float32)
        buf[row:row + a.shape[0], :a.shape[1]] = a

    # fold 1/sqrt(head_dim) into the Q columns of the fused QKV projection
    qscale = np.ones((3 * D_MODEL,), np.float32)
    for h in range(NUM_HEADS):
        qscale[h * 3 * HEAD_DIM:h * 3 * HEAD_DIM + HEAD_DIM] = 1.0 / math.sqrt(HEAD_DIM)

    put(ROW_WE, p["We"])
    put(ROW_WQKV, np.asarray(p["Wqkv"], np.float32) * qscale[None, :])
    put(ROW_WL, p["Wl"])
    put(ROW_W1, p["W1"])
    put(ROW_W2, p["W2"])

    vecs = [np.asarray(p["be"], np.float32),
            np.asarray(p["bqkv"], np.float32) * qscale[None, :],
            np.asarray(p["bl"], np.float32),
            np.asarray(p["g1"], np.float32),
            np.asarray(p["b1n"], np.float32),
            np.asarray(p["b1"], np.float32),
            np.asarray(p["b2"], np.float32),
            np.asarray(p["g2"], np.float32),
            np.asarray(p["b2n"], np.float32)]
    for i, v in enumerate(vecs):
        put(ROW_VEC + i, v)

    # block-diagonal additive mask over the (batch, head) stacked rows
    blk = np.arange(N_STACK) // S
    mask = np.where(blk[:, None] == blk[None, :], 0.0, NEG_INF).astype(np.float32)
    put(ROW_MASK, mask)

    return jnp.asarray(buf)


# ============================ pure-JAX reference =============================
def reference(x, p):
    emb = x @ p["We"] + p["be"]
    qkv = emb @ p["Wqkv"] + p["bqkv"]                       # (B, S, 3*D)
    qkv = qkv.reshape(B, S, NUM_HEADS, 3 * HEAD_DIM).transpose(0, 2, 1, 3)
    q, k, v = (qkv[..., :HEAD_DIM],
               qkv[..., HEAD_DIM:2 * HEAD_DIM],
               qkv[..., 2 * HEAD_DIM:])
    scores = jnp.einsum("bhqd,bhkd->bhqk", q, k) / math.sqrt(HEAD_DIM)
    attn = jax.nn.softmax(scores, axis=-1)
    vals = jnp.einsum("bhqk,bhkd->bhqd", attn, v)           # (B, H, S, hd)
    vals = vals.reshape(B, S, NUM_HEADS * HEAD_DIM)         # torch's exact reshape

    def ln(z, g, bta):
        mu = jnp.mean(z, axis=-1, keepdims=True)
        var = jnp.mean((z - mu) ** 2, axis=-1, keepdims=True)
        return g * ((z - mu) / jnp.sqrt(var + EPS)) + bta

    x1 = ln(vals @ p["Wl"] + p["bl"] + emb, p["g1"], p["b1n"])
    h = jnp.maximum(x1 @ p["W1"] + p["b1"], 0.0)
    h = h @ p["W2"] + p["b2"]
    return ln(h + x1, p["g2"], p["b2n"])


# ================================= params ====================================
def make_params(key):
    ks = jax.random.split(key, 8)
    scale = 0.1
    return {
        "We":   scale * jax.random.normal(ks[0], (D_DATA, D_MODEL), jnp.float32),
        "be":   scale * jax.random.normal(ks[1], (1, D_MODEL), jnp.float32),
        "Wqkv": scale * jax.random.normal(ks[2], (D_MODEL, 3 * D_MODEL), jnp.float32),
        "bqkv": scale * jax.random.normal(ks[3], (1, 3 * D_MODEL), jnp.float32),
        "Wl":   scale * jax.random.normal(ks[4], (D_MODEL, D_MODEL), jnp.float32),
        "bl":   scale * jax.random.normal(ks[5], (1, D_MODEL), jnp.float32),
        "W1":   scale * jax.random.normal(ks[6], (D_MODEL, FFN_HIDDEN), jnp.float32),
        "b1":   jnp.zeros((1, FFN_HIDDEN), jnp.float32),
        "W2":   scale * jax.random.normal(ks[7], (FFN_HIDDEN, D_MODEL), jnp.float32),
        "b2":   jnp.zeros((1, D_MODEL), jnp.float32),
        "g1":   jnp.ones((1, D_MODEL), jnp.float32),
        "b1n":  jnp.zeros((1, D_MODEL), jnp.float32),
        "g2":   jnp.ones((1, D_MODEL), jnp.float32),
        "b2n":  jnp.zeros((1, D_MODEL), jnp.float32),
    }


# ================================= main ======================================
if __name__ == "__main__":
    key = jax.random.PRNGKey(0)
    kx, kp = jax.random.split(key)
    x = jax.random.normal(kx, (B, S, D_DATA), jnp.float32)
    params = make_params(kp)
    packed = pack_params(params)          # packed once; amortized over calls

    out = encoder_layer(x, packed)
    out = jax.block_until_ready(out)

    ref = reference(x, params)
    assert out.shape == (B, S, D_MODEL)
    assert jnp.allclose(out, ref, atol=1e-4, rtol=1e-4), (
        f"max abs err {jnp.max(jnp.abs(out - ref))}")

    print("KERNEL_OK")
</pallas_src>

<mosaic_0001>
module attributes {stable_mosaic.version = 11 : i64} {
  func.func @encoder_kernel(%arg0: memref<16x16xf32, #tpu.memory_space<vmem>>, %arg1: memref<256x128xf32, #tpu.memory_space<vmem>>, %arg2: memref<16x32xf32, #tpu.memory_space<vmem>>, %arg3: memref<64x24xf32, #tpu.memory_space<vmem>>, %arg4: memref<64x8xf32, #tpu.memory_space<vmem>>) attributes {dimension_semantics = [], scalar_prefetch = 0 : i64, scratch_operands = 2 : i64, tpu.core_type = #tpu.core_type<tc>} {
    %c0 = arith.constant 0 : index
    %c0_0 = arith.constant 0 : index
    %0 = vector.load %arg0[%c0, %c0_0] : memref<16x16xf32, #tpu.memory_space<vmem>>, vector<16x16xf32>
    %c0_1 = arith.constant 0 : index
    %c0_2 = arith.constant 0 : index
    %1 = vector.load %arg1[%c0_1, %c0_2] : memref<256x128xf32, #tpu.memory_space<vmem>>, vector<16x32xf32>
    %c32 = arith.constant 32 : index
    %c0_3 = arith.constant 0 : index
    %2 = vector.load %arg1[%c32, %c0_3] : memref<256x128xf32, #tpu.memory_space<vmem>>, vector<32x96xf32>
    %c64 = arith.constant 64 : index
    %c0_4 = arith.constant 0 : index
    %3 = vector.load %arg1[%c64, %c0_4] : memref<256x128xf32, #tpu.memory_space<vmem>>, vector<32x32xf32>
    %c96 = arith.constant 96 : index
    %c0_5 = arith.constant 0 : index
    %4 = vector.load %arg1[%c96, %c0_5] : memref<256x128xf32, #tpu.memory_space<vmem>>, vector<32x64xf32>
    %c128 = arith.constant 128 : index
    %c0_6 = arith.constant 0 : index
    %5 = vector.load %arg1[%c128, %c0_6] : memref<256x128xf32, #tpu.memory_space<vmem>>, vector<64x32xf32>
    %c192 = arith.constant 192 : index
    %c0_7 = arith.constant 0 : index
    %6 = vector.load %arg1[%c192, %c0_7] : memref<256x128xf32, #tpu.memory_space<vmem>>, vector<64x64xf32>
    %c16 = arith.constant 16 : index
    %c0_8 = arith.constant 0 : index
    %7 = vector.load %arg1[%c16, %c0_8] : memref<256x128xf32, #tpu.memory_space<vmem>>, vector<1x32xf32>
    %c17 = arith.constant 17 : index
    %c0_9 = arith.constant 0 : index
    %8 = vector.load %arg1[%c17, %c0_9] : memref<256x128xf32, #tpu.memory_space<vmem>>, vector<1x96xf32>
    %c18 = arith.constant 18 : index
    %c0_10 = arith.constant 0 : index
    %9 = vector.load %arg1[%c18, %c0_10] : memref<256x128xf32, #tpu.memory_space<vmem>>, vector<1x32xf32>
    %c19 = arith.constant 19 : index
    %c0_11 = arith.constant 0 : index
    %10 = vector.load %arg1[%c19, %c0_11] : memref<256x128xf32, #tpu.memory_space<vmem>>, vector<1x32xf32>
    %c20 = arith.constant 20 : index
    %c0_12 = arith.constant 0 : index
    %11 = vector.load %arg1[%c20, %c0_12] : memref<256x128xf32, #tpu.memory_space<vmem>>, vector<1x32xf32>
    %c21 = arith.constant 21 : index
    %c0_13 = arith.constant 0 : index
    %12 = vector.load %arg1[%c21, %c0_13] : memref<256x128xf32, #tpu.memory_space<vmem>>, vector<1x64xf32>
    %c22 = arith.constant 22 : index
    %c0_14 = arith.constant 0 : index
    %13 = vector.load %arg1[%c22, %c0_14] : memref<256x128xf32, #tpu.memory_space<vmem>>, vector<1x32xf32>
    %c23 = arith.constant 23 : index
    %c0_15 = arith.constant 0 : index
    %14 = vector.load %arg1[%c23, %c0_15] : memref<256x128xf32, #tpu.memory_space<vmem>>, vector<1x32xf32>
    %c24 = arith.constant 24 : index
    %c0_16 = arith.constant 0 : index
    %15 = vector.load %arg1[%c24, %c0_16] : memref<256x128xf32, #tpu.memory_space<vmem>>, vector<1x32xf32>
    %cst = arith.constant dense<0.000000e+00> : vector<16x32xf32>
    %16 = tpu.matmul %0, %1, %cst {dimension_numbers = #tpu.dot_dimension_numbers<[1], [0], [0], [1], [0, 0, 1, 1], [], []>} : vector<16x16xf32>, vector<16x32xf32>, vector<16x32xf32> -> vector<16x32xf32>
    %17 = vector.broadcast %7 : vector<1x32xf32> to vector<16x32xf32>
    %18 = arith.addf %16, %17 : vector<16x32xf32>
    %cst_17 = arith.constant dense<0.000000e+00> : vector<16x96xf32>
    %19 = tpu.matmul %18, %2, %cst_17 {dimension_numbers = #tpu.dot_dimension_numbers<[1], [0], [0], [1], [0, 0, 1, 1], [], []>} : vector<16x32xf32>, vector<32x96xf32>, vector<16x96xf32> -> vector<16x96xf32>
    %20 = vector.broadcast %8 : vector<1x96xf32> to vector<16x96xf32>
    %21 = arith.addf %19, %20 : vector<16x96xf32>
    %22 = vector.extract_strided_slice %21 {offsets = [0, 0], sizes = [8, 24], strides = [1, 1]} : vector<16x96xf32> to vector<8x24xf32>
    %c0_18 = arith.constant 0 : index
    %c0_19 = arith.constant 0 : index
    %23 = vector.load %arg3[%c0_18, %c0_19] : memref<64x24xf32, #tpu.memory_space<vmem>>, vector<8x24xf32>
    tpu.vector_store %arg3[%c0_18, %c0_19], %22 {strides = array<i32>} : memref<64x24xf32, #tpu.memory_space<vmem>>, vector<8x24xf32>,
    %24 = vector.extract_strided_slice %21 {offsets = [0, 24], sizes = [8, 24], strides = [1, 1]} : vector<16x96xf32> to vector<8x24xf32>
    %c8 = arith.constant 8 : index
    %c0_20 = arith.constant 0 : index
    %25 = vector.load %arg3[%c8, %c0_20] : memref<64x24xf32, #tpu.memory_space<vmem>>, vector<8x24xf32>
    tpu.vector_store %arg3[%c8, %c0_20], %24 {strides = array<i32>} : memref<64x24xf32, #tpu.memory_space<vmem>>, vector<8x24xf32>,
    %26 = vector.extract_strided_slice %21 {offsets = [0, 48], sizes = [8, 24], strides = [1, 1]} : vector<16x96xf32> to vector<8x24xf32>
    %c16_21 = arith.constant 16 : index
    %c0_22 = arith.constant 0 : index
    %27 = vector.load %arg3[%c16_21, %c0_22] : memref<64x24xf32, #tpu.memory_space<vmem>>, vector<8x24xf32>
    tpu.vector_store %arg3[%c16_21, %c0_22], %26 {strides = array<i32>} : memref<64x24xf32, #tpu.memory_space<vmem>>, vector<8x24xf32>,
    %28 = vector.extract_strided_slice %21 {offsets = [0, 72], sizes = [8, 24], strides = [1, 1]} : vector<16x96xf32> to vector<8x24xf32>
    %c24_23 = arith.constant 24 : index
    %c0_24 = arith.constant 0 : index
    %29 = vector.load %arg3[%c24_23, %c0_24] : memref<64x24xf32, #tpu.memory_space<vmem>>, vector<8x24xf32>
    tpu.vector_store %arg3[%c24_23, %c0_24], %28 {strides = array<i32>} : memref<64x24xf32, #tpu.memory_space<vmem>>, vector<8x24xf32>,
    %30 = vector.extract_strided_slice %21 {offsets = [8, 0], sizes = [8, 24], strides = [1, 1]} : vector<16x96xf32> to vector<8x24xf32>
    %c32_25 = arith.constant 32 : index
    %c0_26 = arith.constant 0 : index
    %31 = vector.load %arg3[%c32_25, %c0_26] : memref<64x24xf32, #tpu.memory_space<vmem>>, vector<8x24xf32>
    tpu.vector_store %arg3[%c32_25, %c0_26], %30 {strides = array<i32>} : memref<64x24xf32, #tpu.memory_space<vmem>>, vector<8x24xf32>,
    %32 = vector.extract_strided_slice %21 {offsets = [8, 24], sizes = [8, 24], strides = [1, 1]} : vector<16x96xf32> to vector<8x24xf32>
    %c40 = arith.constant 40 : index
    %c0_27 = arith.constant 0 : index
    %33 = vector.load %arg3[%c40, %c0_27] : memref<64x24xf32, #tpu.memory_space<vmem>>, vector<8x24xf32>
    tpu.vector_store %arg3[%c40, %c0_27], %32 {strides = array<i32>} : memref<64x24xf32, #tpu.memory_space<vmem>>, vector<8x24xf32>,
    %34 = vector.extract_strided_slice %21 {offsets = [8, 48], sizes = [8, 24], strides = [1, 1]} : vector<16x96xf32> to vector<8x24xf32>
    %c48 = arith.constant 48 : index
    %c0_28 = arith.constant 0 : index
    %35 = vector.load %arg3[%c48, %c0_28] : memref<64x24xf32, #tpu.memory_space<vmem>>, vector<8x24xf32>
    tpu.vector_store %arg3[%c48, %c0_28], %34 {strides = array<i32>} : memref<64x24xf32, #tpu.memory_space<vmem>>, vector<8x24xf32>,
    %36 = vector.extract_strided_slice %21 {offsets = [8, 72], sizes = [8, 24], strides = [1, 1]} : vector<16x96xf32> to vector<8x24xf32>
    %c56 = arith.constant 56 : index
    %c0_29 = arith.constant 0 : index
    %37 = vector.load %arg3[%c56, %c0_29] : memref<64x24xf32, #tpu.memory_space<vmem>>, vector<8x24xf32>
    tpu.vector_store %arg3[%c56, %c0_29], %36 {strides = array<i32>} : memref<64x24xf32, #tpu.memory_space<vmem>>, vector<8x24xf32>,
    %c0_30 = arith.constant 0 : index
    %c0_31 = arith.constant 0 : index
    %38 = vector.load %arg3[%c0_30, %c0_31] : memref<64x24xf32, #tpu.memory_space<vmem>>, vector<64x8xf32>
    %c0_32 = arith.constant 0 : index
    %c8_33 = arith.constant 8 : index
    %39 = vector.load %arg3[%c0_32, %c8_33] : memref<64x24xf32, #tpu.memory_space<vmem>>, vector<64x8xf32>
    %c0_34 = arith.constant 0 : index
    %c16_35 = arith.constant 16 : index
    %40 = vector.load %arg3[%c0_34, %c16_35] : memref<64x24xf32, #tpu.memory_space<vmem>>, vector<64x8xf32>
    %cst_36 = arith.constant dense<0.000000e+00> : vector<64x64xf32>
    %41 = tpu.matmul %38, %39, %cst_36 {dimension_numbers = #tpu.dot_dimension_numbers<[1], [1], [0], [0], [0, 0, 1, 0], [], []>} : vector<64x8xf32>, vector<64x8xf32>, vector<64x64xf32> -> vector<64x64xf32>
    %42 = arith.addf %41, %6 : vector<64x64xf32>
    %cst_37 = arith.constant dense<0xFF800000> : vector<64xf32>
    %43 = vector.multi_reduction <maximumf>, %42, %cst_37 [1] : vector<64x64xf32> to vector<64xf32>
    %44 = vector.shape_cast %43 : vector<64xf32> to vector<64x1xf32>
    %45 = vector.broadcast %44 : vector<64x1xf32> to vector<64x64xf32>
    %46 = arith.subf %42, %45 : vector<64x64xf32>
    %47 = math.exp %46 : vector<64x64xf32>
    %cst_38 = arith.constant dense<0.000000e+00> : vector<64xf32>
    %48 = vector.multi_reduction <add>, %47, %cst_38 [1] : vector<64x64xf32> to vector<64xf32>
    %49 = vector.shape_cast %48 : vector<64xf32> to vector<64x1xf32>
    %50 = tpu.reciprocal %49 : vector<64x1xf32> -> vector<64x1xf32>
    %51 = vector.broadcast %50 : vector<64x1xf32> to vector<64x64xf32>
    %52 = arith.mulf %47, %51 : vector<64x64xf32>
    %cst_39 = arith.constant dense<0.000000e+00> : vector<64x8xf32>
    %53 = tpu.matmul %52, %40, %cst_39 {dimension_numbers = #tpu.dot_dimension_numbers<[1], [0], [0], [1], [0, 0, 1, 1], [], []>} : vector<64x64xf32>, vector<64x8xf32>, vector<64x8xf32> -> vector<64x8xf32>
    %c0_40 = arith.constant 0 : index
    %c0_41 = arith.constant 0 : index
    %54 = vector.load %arg4[%c0_40, %c0_41] : memref<64x8xf32, #tpu.memory_space<vmem>>, vector<64x8xf32>
    tpu.vector_store %arg4[%c0_40, %c0_41], %53 {strides = array<i32>} : memref<64x8xf32, #tpu.memory_space<vmem>>, vector<64x8xf32>,
    %c0_42 = arith.constant 0 : index
    %c0_43 = arith.constant 0 : index
    %55 = tpu.strided_load %arg4[%c0_42, %c0_43] {strides = array<i32: 4, 1>} : memref<64x8xf32, #tpu.memory_space<vmem>>, vector<16x8xf32>
    %c1 = arith.constant 1 : index
    %c0_44 = arith.constant 0 : index
    %56 = tpu.strided_load %arg4[%c1, %c0_44] {strides = array<i32: 4, 1>} : memref<64x8xf32, #tpu.memory_space<vmem>>, vector<16x8xf32>
    %c2 = arith.constant 2 : index
    %c0_45 = arith.constant 0 : index
    %57 = tpu.strided_load %arg4[%c2, %c0_45] {strides = array<i32: 4, 1>} : memref<64x8xf32, #tpu.memory_space<vmem>>, vector<16x8xf32>
    %c3 = arith.constant 3 : index
    %c0_46 = arith.constant 0 : index
    %58 = tpu.strided_load %arg4[%c3, %c0_46] {strides = array<i32: 4, 1>} : memref<64x8xf32, #tpu.memory_space<vmem>>, vector<16x8xf32>
    %59 = tpu.concatenate %55, %56, %57, %58 in 1 : vector<16x8xf32>, vector<16x8xf32>, vector<16x8xf32>, vector<16x8xf32> -> vector<16x32xf32>
    %cst_47 = arith.constant dense<0.000000e+00> : vector<16x32xf32>
    %60 = tpu.matmul %59, %3, %cst_47 {dimension_numbers = #tpu.dot_dimension_numbers<[1], [0], [0], [1], [0, 0, 1, 1], [], []>} : vector<16x32xf32>, vector<32x32xf32>, vector<16x32xf32> -> vector<16x32xf32>
    %61 = vector.broadcast %9 : vector<1x32xf32> to vector<16x32xf32>
    %62 = arith.addf %60, %61 : vector<16x32xf32>
    %63 = arith.addf %62, %18 : vector<16x32xf32>
    %cst_48 = arith.constant dense<0.000000e+00> : vector<16xf32>
    %64 = vector.multi_reduction <add>, %63, %cst_48 [1] : vector<16x32xf32> to vector<16xf32>
    %65 = vector.shape_cast %64 : vector<16xf32> to vector<16x1xf32>
    %cst_49 = arith.constant 3.200000e+01 : f32
    %66 = vector.broadcast %cst_49 : f32 to vector<16x1xf32>
    %67 = arith.divf %65, %66 : vector<16x1xf32>
    %68 = vector.broadcast %67 : vector<16x1xf32> to vector<16x32xf32>
    %69 = arith.subf %63, %68 : vector<16x32xf32>
    %70 = arith.mulf %69, %69 : vector<16x32xf32>
    %cst_50 = arith.constant dense<0.000000e+00> : vector<16xf32>
    %71 = vector.multi_reduction <add>, %70, %cst_50 [1] : vector<16x32xf32> to vector<16xf32>
    %72 = vector.shape_cast %71 : vector<16xf32> to vector<16x1xf32>
    %cst_51 = arith.constant 3.200000e+01 : f32
    %73 = vector.broadcast %cst_51 : f32 to vector<16x1xf32>
    %74 = arith.divf %72, %73 : vector<16x1xf32>
    %cst_52 = arith.constant 9.99999974E-6 : f32
    %75 = vector.broadcast %cst_52 : f32 to vector<16x1xf32>
    %76 = arith.addf %74, %75 : vector<16x1xf32>
    %77 = math.rsqrt %76 : vector<16x1xf32>
    %78 = vector.broadcast %77 : vector<16x1xf32> to vector<16x32xf32>
    %79 = arith.mulf %69, %78 : vector<16x32xf32>
    %80 = vector.broadcast %10 : vector<1x32xf32> to vector<16x32xf32>
    %81 = arith.mulf %80, %79 : vector<16x32xf32>
    %82 = vector.broadcast %11 : vector<1x32xf32> to vector<16x32xf32>
    %83 = arith.addf %81, %82 : vector<16x32xf32>
    %cst_53 = arith.constant dense<0.000000e+00> : vector<16x64xf32>
    %84 = tpu.matmul %83, %4, %cst_53 {dimension_numbers = #tpu.dot_dimension_numbers<[1], [0], [0], [1], [0, 0, 1, 1], [], []>} : vector<16x32xf32>, vector<32x64xf32>, vector<16x64xf32> -> vector<16x64xf32>
    %85 = vector.broadcast %12 : vector<1x64xf32> to vector<16x64xf32>
    %86 = arith.addf %84, %85 : vector<16x64xf32>
    %cst_54 = arith.constant 0.000000e+00 : f32
    %87 = vector.broadcast %cst_54 : f32 to vector<16x64xf32>
    %88 = arith.maximumf %86, %87 : vector<16x64xf32>
    %cst_55 = arith.constant dense<0.000000e+00> : vector<16x32xf32>
    %89 = tpu.matmul %88, %5, %cst_55 {dimension_numbers = #tpu.dot_dimension_numbers<[1], [0], [0], [1], [0, 0, 1, 1], [], []>} : vector<16x64xf32>, vector<64x32xf32>, vector<16x32xf32> -> vector<16x32xf32>
    %90 = vector.broadcast %13 : vector<1x32xf32> to vector<16x32xf32>
    %91 = arith.addf %89, %90 : vector<16x32xf32>
    %92 = arith.addf %91, %83 : vector<16x32xf32>
    %cst_56 = arith.constant dense<0.000000e+00> : vector<16xf32>
    %93 = vector.multi_reduction <add>, %92, %cst_56 [1] : vector<16x32xf32> to vector<16xf32>
    %94 = vector.shape_cast %93 : vector<16xf32> to vector<16x1xf32>
    %cst_57 = arith.constant 3.200000e+01 : f32
    %95 = vector.broadcast %cst_57 : f32 to vector<16x1xf32>
    %96 = arith.divf %94, %95 : vector<16x1xf32>
    %97 = vector.broadcast %96 : vector<16x1xf32> to vector<16x32xf32>
    %98 = arith.subf %92, %97 : vector<16x32xf32>
    %99 = arith.mulf %98, %98 : vector<16x32xf32>
    %cst_58 = arith.constant dense<0.000000e+00> : vector<16xf32>
    %100 = vector.multi_reduction <add>, %99, %cst_58 [1] : vector<16x32xf32> to vector<16xf32>
    %101 = vector.shape_cast %100 : vector<16xf32> to vector<16x1xf32>
    %cst_59 = arith.constant 3.200000e+01 : f32
    %102 = vector.broadcast %cst_59 : f32 to vector<16x1xf32>
    %103 = arith.divf %101, %102 : vector<16x1xf32>
    %cst_60 = arith.constant 9.99999974E-6 : f32
    %104 = vector.broadcast %cst_60 : f32 to vector<16x1xf32>
    %105 = arith.addf %103, %104 : vector<16x1xf32>
    %106 = math.rsqrt %105 : vector<16x1xf32>
    %107 = vector.broadcast %106 : vector<16x1xf32> to vector<16x32xf32>
    %108 = arith.mulf %98, %107 : vector<16x32xf32>
    %109 = vector.broadcast %14 : vector<1x32xf32> to vector<16x32xf32>
    %110 = arith.mulf %109, %108 : vector<16x32xf32>
    %111 = vector.broadcast %15 : vector<1x32xf32> to vector<16x32xf32>
    %112 = arith.addf %110, %111 : vector<16x32xf32>
    %c0_61 = arith.constant 0 : index
    %c0_62 = arith.constant 0 : index
    %113 = vector.load %arg2[%c0_61, %c0_62] : memref<16x32xf32, #tpu.memory_space<vmem>>, vector<16x32xf32>
    tpu.vector_store %arg2[%c0_61, %c0_62], %112 {strides = array<i32>} : memref<16x32xf32, #tpu.memory_space<vmem>>, vector<16x32xf32>,
    return
  }
}

</mosaic_0001>

<llo_original>
// kernel: encoder_layer.1
$region0: #{encoder_layer.1}
  #allocation0 [shape = 'u32[]', space=smem, size = 0x4, offset = 0x4, fixed_abs, tag = 'smem constant byte address 0x4 - core index']
  #allocation1 [shape = 'u32[144,128]{1,0:T(1,128)}', space=vmem, size = 0x12000, scoped, tag = 'internal scratch']
  #allocation2 [shape = 'f32[64,24]{1,0:T(8,128)}', space=vmem, size = 0x8000, scoped, tag = 'scratch operand']
  #allocation3 [shape = 'f32[64,8]{1,0:T(8,128)}', space=vmem, size = 0x8000, scoped, tag = 'scratch operand']
  %s0 = inlined_call_operand.hbm [shape: f32[16,16], index: 0, kind: input, shape index: {}]
  %s1 = inlined_call_operand.hbm [shape: f32[256,128], index: 1, kind: input, shape index: {}]
  %s2 = inlined_call_operand.hbm [shape: f32[16,32], index: 2, kind: output, shape index: {}]
  %s3 = sld [smem:[#allocation0]]
  $region26: #{encoder_layer.1} parent=0
    _
  %s5 = ssub.s32 1, %s3
  %s6 = scalar_select 0, %s5, %s3
  $region1: #{encoder_layer.1} parent=0
    #allocation4 [shape = 'u8[8192]{0}', space=vmem, size = 0x2000, scoped, tag = 'input window, operand 0, single buffered']
    #allocation5 [shape = 's32[1]{0}', space=sflag, size = 0x4, scoped, tag = 'scoped memory for encoder_layer.1']
    #allocation6 [shape = 's32[1]{0}', space=sflag, size = 0x4, scoped, tag = 'scoped memory for encoder_layer.1']
    #allocation7 [shape = 'u8[131072]{0}', space=vmem, size = 0x20000, scoped, tag = 'input window, operand 1, single buffered']
    #allocation8 [shape = 's32[1]{0}', space=sflag, size = 0x4, scoped, tag = 'scoped memory for encoder_layer.1']
    #allocation9 [shape = 'u8[8192]{0}', space=vmem, size = 0x2000, scoped, tag = 'output window, operand 0, single buffered']
    %7 = vsyncpa [#allocation5], 0
    %8 = vsyncpa [#allocation8], 0
    %9 = vsyncpa [#allocation6], 0
    // Predicated region
    $region2: #{encoder_layer.1} parent=1 // pred_check
      _
    $region3: #{encoder_layer.1} parent=1 // pred_check_branch
      %11 = sbr.rel (0) target = $region5
    $region4: #{encoder_layer.1} parent=1 // pred_region
      %s13 = ssub.s32 256, 256
      %14 = vsyncadd [#allocation5], %s13
      %s15 = sshll.u32 [#allocation4], 4
      %s16 = int_to_ptr.vmem [resolvable:$true] %s15
      %21 = dma.hbm_to_vmem [thread:$0]  %s0, 256, %s16, [#allocation5], 128, 128, 8
    $region5: #{encoder_layer.1} parent=1 // pred_fallthru
      _
    // Predicated region
    $region6: #{encoder_layer.1} parent=1 // pred_check
      _
    $region7: #{encoder_layer.1} parent=1 // pred_check_branch
      %23 = sbr.rel (0) target = $region9
    $region8: #{encoder_layer.1} parent=1 // pred_region
      %s25 = ssub.s32 4096, 4096
      %26 = vsyncadd [#allocation8], %s25
      %s27 = sshll.u32 [#allocation7], 4
      %s28 = int_to_ptr.vmem [resolvable:$true] %s27
      %33 = dma.hbm_to_vmem [thread:$0]  %s1, 4096, %s28, [#allocation8], 128, 128, 8
    $region9: #{encoder_layer.1} parent=1 // pred_fallthru
      _
    // Predicated region
    $region10: #{encoder_layer.1} parent=1 // pred_check
      _
    $region11: #{encoder_layer.1} parent=1 // pred_check_branch
      %35 = sbr.rel (0) target = $region13
    $region12: #{encoder_layer.1} parent=1 // pred_region
      %36 = dma.done [#allocation5], 256
    $region13: #{encoder_layer.1} parent=1 // pred_fallthru
      _
    // Predicated region
    $region14: #{encoder_layer.1} parent=1 // pred_check
      _
    $region15: #{encoder_layer.1} parent=1 // pred_check_branch
      %38 = sbr.rel (0) target = $region17
    $region16: #{encoder_layer.1} parent=1 // pred_region
      %39 = dma.done [#allocation8], 4096
    $region17: #{encoder_layer.1} parent=1 // pred_fallthru
      _
    %v40 = vld [vmem:[#allocation4] sm:$0xff]
    %v41 = vld [vmem:[#allocation4 + $0x8] sm:$0xff]
    %v42 = vld [vmem:[#allocation7] sm:$0xff]
    %v43 = vld [vmem:[#allocation7 + $0x8] sm:$0xff]
    %v44 = vld [vmem:[#allocation7 + $0x20] sm:$0xff]
    %v45 = vld [vmem:[#allocation7 + $0x28] sm:$0xff]
    %v46 = vld [vmem:[#allocation7 + $0x30] sm:$0xff]
    %v47 = vld [vmem:[#allocation7 + $0x38] sm:$0xff]
    %v48 = vld [vmem:[#allocation7 + $0x40] sm:$0xff]
    %v49 = vld [vmem:[#allocation7 + $0x48] sm:$0xff]
    %v50 = vld [vmem:[#allocation7 + $0x50] sm:$0xff]
    %v51 = vld [vmem:[#allocation7 + $0x58] sm:$0xff]
    %v52 = vld [vmem:[#allocation7 + $0x60] sm:$0xff]
    %v53 = vld [vmem:[#allocation7 + $0x68] sm:$0xff]
    %v54 = vld [vmem:[#allocation7 + $0x70] sm:$0xff]
    %v55 = vld [vmem:[#allocation7 + $0x78] sm:$0xff]
    %v56 = vld [vmem:[#allocation7 + $0x80] sm:$0xff]
    %v57 = vld [vmem:[#allocation7 + $0x88] sm:$0xff]
    %v58 = vld [vmem:[#allocation7 + $0x90] sm:$0xff]
    %v59 = vld [vmem:[#allocation7 + $0x98] sm:$0xff]
    %v60 = vld [vmem:[#allocation7 + $0xa0] sm:$0xff]
    %v61 = vld [vmem:[#allocation7 + $0xa8] sm:$0xff]
    %v62 = vld [vmem:[#allocation7 + $0xb0] sm:$0xff]
    %v63 = vld [vmem:[#allocation7 + $0xb8] sm:$0xff]
    %v64 = vld [vmem:[#allocation7 + $0xc0] sm:$0xff]
    %v65 = vld [vmem:[#allocation7 + $0xc8] sm:$0xff]
    %v66 = vld [vmem:[#allocation7 + $0xd0] sm:$0xff]
    %v67 = vld [vmem:[#allocation7 + $0xd8] sm:$0xff]
    %v68 = vld [vmem:[#allocation7 + $0xe0] sm:$0xff]
    %v69 = vld [vmem:[#allocation7 + $0xe8] sm:$0xff]
    %v70 = vld [vmem:[#allocation7 + $0xf0] sm:$0xff]
    %v71 = vld [vmem:[#allocation7 + $0xf8] sm:$0xff]
    %v72 = vld [vmem:[#allocation7 + $0x10] sm:$0x1]
    %v73 = vld [vmem:[#allocation7 + $0x11] sm:$0x1]
    %v74 = vld [vmem:[#allocation7 + $0x12] sm:$0x1]
    %v75 = vld [vmem:[#allocation7 + $0x13] sm:$0x1]
    %v76 = vld [vmem:[#allocation7 + $0x14] sm:$0x1]
    %v77 = vld [vmem:[#allocation7 + $0x15] sm:$0x1]
    %v78 = vld [vmem:[#allocation7 + $0x16] sm:$0x1]
    %v79 = vld [vmem:[#allocation7 + $0x17] sm:$0x1]
    %v80 = vld [vmem:[#allocation7 + $0x18] sm:$0x1]
    %v81 = vlaneseq
    %v82 = vshrl.u32 %v81, 7
    %v83 = vsub.s32 0, %v82
    %v84 = vrot.slane %v72, %v83
    %vm85 = vcmask 130048
    %v87 = vsel %vm85, %v40, 0
    %v90 = vsel %vm85, %v41, 0
    %92 = vmatprep.subr.mxu0 0.0
    %93 = vmatpush1.msra.mxu0 0.0
    %94 = vmatprep.subr.mxu0 0.0
    %95 = vmatpush1.msra.mxu0 0.0
    %96 = vmatprep.subr.mxu0 0.0
    %97 = vmatpush1.msra.mxu0 0.0
    %98 = vmatprep.subr.mxu0 0.0
    %99 = vmatpush1.msra.mxu0 0.0
    %100 = vmatprep.subr.mxu0 0.0
    %101 = vmatpush1.msra.mxu0 0.0
    %102 = vmatprep.subr.mxu0 0.0
    %103 = vmatpush1.msra.mxu0 0.0
    %104 = vmatprep.subr.mxu0 0.0
    %105 = vmatpush1.msra.mxu0 0.0
    %106 = vmatprep.subr.mxu0 0.0
    %107 = vmatpush1.msra.mxu0 0.0
    %108 = vmatprep.subr.mxu0 0.0
    %109 = vmatpush1.msra.mxu0 0.0
    %110 = vmatprep.subr.mxu0 0.0
    %111 = vmatpush1.msra.mxu0 0.0
    %112 = vmatprep.subr.mxu0 0.0
    %113 = vmatpush1.msra.mxu0 0.0
    %114 = vmatprep.subr.mxu0 0.0
    %115 = vmatpush1.msra.mxu0 0.0
    %116 = vmatprep.subr.mxu0 0.0
    %117 = vmatpush1.msra.mxu0 0.0
    %118 = vmatprep.subr.mxu0 0.0
    %119 = vmatpush1.msra.mxu0 0.0
    %120 = vmatprep.subr.mxu0 0.0
    %121 = vmatpush1.msra.mxu0 %v43
    %122 = vmatprep.subr.mxu0 0.0
    %123 = vmatpush1.msra.mxu0 %v42
    %124 = vmatprep.subr.mxu0 0.0
    %125 = vmatpush2.msra.mxu0 0.0
    %126 = vmatprep.subr.mxu0 0.0
    %127 = vmatpush2.msra.mxu0 0.0
    %128 = vmatprep.subr.mxu0 0.0
    %129 = vmatpush2.msra.mxu0 0.0
    %130 = vmatprep.subr.mxu0 0.0
    %131 = vmatpush2.msra.mxu0 0.0
    %132 = vmatprep.subr.mxu0 0.0
    %133 = vmatpush2.msra.mxu0 0.0
    %134 = vmatprep.subr.mxu0 0.0
    %135 = vmatpush2.msra.mxu0 0.0
    %136 = vmatprep.subr.mxu0 0.0
    %137 = vmatpush2.msra.mxu0 0.0
    %138 = vmatprep.subr.mxu0 0.0
    %139 = vmatpush2.msra.mxu0 0.0
    %140 = vmatprep.subr.mxu0 0.0
    %141 = vmatpush2.msra.mxu0 0.0
    %142 = vmatprep.subr.mxu0 0.0
    %143 = vmatpush2.msra.mxu0 0.0
    %144 = vmatprep.subr.mxu0 0.0
    %145 = vmatpush2.msra.mxu0 0.0
    %146 = vmatprep.subr.mxu0 0.0
    %147 = vmatpush2.msra.mxu0 0.0
    %148 = vmatprep.subr.mxu0 0.0
    %149 = vmatpush2.msra.mxu0 0.0
    %150 = vmatprep.subr.mxu0 0.0
    %151 = vmatpush2.msra.mxu0 0.0
    %152 = vmatprep.subr.mxu0 0.0
    %153 = vmatpush2.msra.mxu0 0.0
    %154 = vmatprep.subr.mxu0 0.0
    %155 = vmatpush2.msra.mxu0 0.0
    %156 = vmatprep.mubr.f32.mxu0 0.0
    %157 = vmatmul.mubr.f32.gmra.mxu0 %v87
    %v158 = vpop.f32.mrf.mxu0
    %v159 = vadd.f32 %v84, %v158
    %v160 = vpop.f32.mrf.mxu0
    %161 = vmatprep.mubr.f32.mxu0 0.0
    %162 = vmatmul.mubr.f32.gmra.mxu0 %v90
    %v163 = vpop.f32.mrf.mxu0
    %v164 = vadd.f32 %v84, %v163
    %v165 = vpop.f32.mrf.mxu0
    %166 = vdwg.mxu0
    %v167 = vlaneseq
    %v168 = vshrl.u32 %v167, 7
    %v169 = vsub.s32 0, %v168
    %v170 = vrot.slane %v73, %v169
    %vm171 = vcmask 261120
    %v173 = vsel %vm171, %v159, 0
    %v176 = vsel %vm171, %v164, 0
    %178 = vmatprep.subr.mxu0 0.0
    %179 = vmatpush1.msra.mxu0 0.0
    %180 = vmatprep.subr.mxu0 0.0
    %181 = vmatpush1.msra.mxu0 0.0
    %182 = vmatprep.subr.mxu0 0.0
    %183 = vmatpush1.msra.mxu0 0.0
    %184 = vmatprep.subr.mxu0 0.0
    %185 = vmatpush1.msra.mxu0 0.0
    %186 = vmatprep.subr.mxu0 0.0
    %187 = vmatpush1.msra.mxu0 0.0
    %188 = vmatprep.subr.mxu0 0.0
    %189 = vmatpush1.msra.mxu0 0.0
    %190 = vmatprep.subr.mxu0 0.0
    %191 = vmatpush1.msra.mxu0 0.0
    %192 = vmatprep.subr.mxu0 0.0
    %193 = vmatpush1.msra.mxu0 0.0
    %194 = vmatprep.subr.mxu0 0.0
    %195 = vmatpush1.msra.mxu0 0.0
    %196 = vmatprep.subr.mxu0 0.0
    %197 = vmatpush1.msra.mxu0 0.0
    %198 = vmatprep.subr.mxu0 0.0
    %199 = vmatpush1.msra.mxu0 0.0
    %200 = vmatprep.subr.mxu0 0.0
    %201 = vmatpush1.msra.mxu0 0.0
    %202 = vmatprep.subr.mxu0 0.0
    %203 = vmatpush1.msra.mxu0 %v47
    %204 = vmatprep.subr.mxu0 0.0
    %205 = vmatpush1.msra.mxu0 %v46
    %206 = vmatprep.subr.mxu0 0.0
    %207 = vmatpush1.msra.mxu0 %v45
    %208 = vmatprep.subr.mxu0 0.0
    %209 = vmatpush1.msra.mxu0 %v44
    %210 = vmatprep.subr.mxu0 0.0
    %211 = vmatpush2.msra.mxu0 0.0
    %212 = vmatprep.subr.mxu0 0.0
    %213 = vmatpush2.msra.mxu0 0.0
    %214 = vmatprep.subr.mxu0 0.0
    %215 = vmatpush2.msra.mxu0 0.0
    %216 = vmatprep.subr.mxu0 0.0
    %217 = vmatpush2.msra.mxu0 0.0
    %218 = vmatprep.subr.mxu0 0.0
    %219 = vmatpush2.msra.mxu0 0.0
    %220 = vmatprep.subr.mxu0 0.0
    %221 = vmatpush2.msra.mxu0 0.0
    %222 = vmatprep.subr.mxu0 0.0
    %223 = vmatpush2.msra.mxu0 0.0
    %224 = vmatprep.subr.mxu0 0.0
    %225 = vmatpush2.msra.mxu0 0.0
    %226 = vmatprep.subr.mxu0 0.0
    %227 = vmatpush2.msra.mxu0 0.0
    %228 = vmatprep.subr.mxu0 0.0
    %229 = vmatpush2.msra.mxu0 0.0
    %230 = vmatprep.subr.mxu0 0.0
    %231 = vmatpush2.msra.mxu0 0.0
    %232 = vmatprep.subr.mxu0 0.0
    %233 = vmatpush2.msra.mxu0 0.0
    %234 = vmatprep.subr.mxu0 0.0
    %235 = vmatpush2.msra.mxu0 0.0
    %236 = vmatprep.subr.mxu0 0.0
    %237 = vmatpush2.msra.mxu0 0.0
    %238 = vmatprep.subr.mxu0 0.0
    %239 = vmatpush2.msra.mxu0 0.0
    %240 = vmatprep.subr.mxu0 0.0
    %241 = vmatpush2.msra.mxu0 0.0
    %242 = vmatprep.mubr.f32.mxu0 0.0
    %243 = vmatmul.mubr.f32.gmra.mxu0 %v173
    %v244 = vpop.f32.mrf.mxu0
    %v245 = vadd.f32 %v170, %v244
    %v246 = vpop.f32.mrf.mxu0
    %247 = vmatprep.mubr.f32.mxu0 0.0
    %248 = vmatmul.mubr.f32.gmra.mxu0 %v176
    %v249 = vpop.f32.mrf.mxu0
    %v250 = vadd.f32 %v170, %v249
    %v251 = vpop.f32.mrf.mxu0
    %252 = vdwg.mxu0
    %vm253 = vcmask 195584
    %254 = vst.msk [vmem:[#allocation2] sm:$0xff] %vm253, %v245
    %256 = vrot.lane.b32.xlu0 %v245, 104
    %v257 = vpop.permute.xlu0 %256
    %259 = vst.msk [vmem:[#allocation2 + $0x8] sm:$0xff] %vm253, %v257
    %260 = vrot.lane.b32.xlu0 %v245, 80
    %v261 = vpop.permute.xlu0 %260
    %263 = vst.msk [vmem:[#allocation2 + $0x10] sm:$0xff] %vm253, %v261
    %264 = vrot.lane.b32.xlu0 %v245, 56
    %v265 = vpop.permute.xlu0 %264
    %267 = vst.msk [vmem:[#allocation2 + $0x18] sm:$0xff] %vm253, %v265
    %268 = vst.msk [vmem:[#allocation2 + $0x20] sm:$0xff] %vm253, %v250
    %270 = vrot.lane.b32.xlu0 %v250, 104
    %v271 = vpop.permute.xlu0 %270
    %273 = vst.msk [vmem:[#allocation2 + $0x28] sm:$0xff] %vm253, %v271
    %274 = vrot.lane.b32.xlu0 %v250, 80
    %v275 = vpop.permute.xlu0 %274
    %277 = vst.msk [vmem:[#allocation2 + $0x30] sm:$0xff] %vm253, %v275
    %278 = vrot.lane.b32.xlu0 %v250, 56
    %v279 = vpop.permute.xlu0 %278
    %281 = vst.msk [vmem:[#allocation2 + $0x38] sm:$0xff] %vm253, %v279
    %v282 = vld [vmem:[#allocation2] sm:$0xff]
    %v283 = vld [vmem:[#allocation2 + $0x8] sm:$0xff]
    %v284 = vld [vmem:[#allocation2 + $0x10] sm:$0xff]
    %v285 = vld [vmem:[#allocation2 + $0x18] sm:$0xff]
    %v286 = vld [vmem:[#allocation2 + $0x20] sm:$0xff]
    %v287 = vld [vmem:[#allocation2 + $0x28] sm:$0xff]
    %v288 = vld [vmem:[#allocation2 + $0x30] sm:$0xff]
    %v289 = vld [vmem:[#allocation2 + $0x38] sm:$0xff]
    %298 = vrot.lane.b32.xlu0 %v282, 120
    %v299 = vpop.permute.xlu0 %298
    %300 = vrot.lane.b32.xlu0 %v283, 120
    %v301 = vpop.permute.xlu0 %300
    %302 = vrot.lane.b32.xlu0 %v284, 120
    %v303 = vpop.permute.xlu0 %302
    %304 = vrot.lane.b32.xlu0 %v285, 120
    %v305 = vpop.permute.xlu0 %304
    %306 = vrot.lane.b32.xlu0 %v286, 120
    %v307 = vpop.permute.xlu0 %306
    %308 = vrot.lane.b32.xlu0 %v287, 120
    %v309 = vpop.permute.xlu0 %308
    %310 = vrot.lane.b32.xlu0 %v288, 120
    %v311 = vpop.permute.xlu0 %310
    %312 = vrot.lane.b32.xlu0 %v289, 120
    %v313 = vpop.permute.xlu0 %312
    %vm314 = vcmask 64512
    %v315 = vsel %vm314, %v282, 0
    %v317 = vsel %vm314, %v283, 0
    %v319 = vsel %vm314, %v284, 0
    %v321 = vsel %vm314, %v285, 0
    %v323 = vsel %vm314, %v286, 0
    %v325 = vsel %vm314, %v287, 0
    %v327 = vsel %vm314, %v288, 0
    %v329 = vsel %vm314, %v289, 0
    %v331 = vsel %vm314, %v299, 0
    %v333 = vsel %vm314, %v301, 0
    %v335 = vsel %vm314, %v303, 0
    %v337 = vsel %vm314, %v305, 0
    %v339 = vsel %vm314, %v307, 0
    %v341 = vsel %vm314, %v309, 0
    %v343 = vsel %vm314, %v311, 0
    %v345 = vsel %vm314, %v313, 0
    %347 = vmatprep.subr.mxu0 0.0
    %348 = vmatpush1.xpose.msra.mxu0 0.0
    %349 = vmatprep.subr.mxu0 0.0
    %350 = vmatpush1.xpose.msra.mxu0 0.0
    %351 = vmatprep.subr.mxu0 0.0
    %352 = vmatpush1.xpose.msra.mxu0 0.0
    %353 = vmatprep.subr.mxu0 0.0
    %354 = vmatpush1.xpose.msra.mxu0 0.0
    %355 = vmatprep.subr.mxu0 0.0
    %356 = vmatpush1.xpose.msra.mxu0 0.0
    %357 = vmatprep.subr.mxu0 0.0
    %358 = vmatpush1.xpose.msra.mxu0 0.0
    %359 = vmatprep.subr.mxu0 0.0
    %360 = vmatpush1.xpose.msra.mxu0 0.0
    %361 = vmatprep.subr.mxu0 0.0
    %362 = vmatpush1.xpose.msra.mxu0 0.0
    %363 = vmatprep.subr.mxu0 0.0
    %364 = vmatpush1.xpose.msra.mxu0 %v345
    %365 = vmatprep.subr.mxu0 0.0
    %366 = vmatpush1.xpose.msra.mxu0 %v343
    %367 = vmatprep.subr.mxu0 0.0
    %368 = vmatpush1.xpose.msra.mxu0 %v341
    %369 = vmatprep.subr.mxu0 0.0
    %370 = vmatpush1.xpose.msra.mxu0 %v339
    %371 = vmatprep.subr.mxu0 0.0
    %372 = vmatpush1.xpose.msra.mxu0 %v337
    %373 = vmatprep.subr.mxu0 0.0
    %374 = vmatpush1.xpose.msra.mxu0 %v335
    %375 = vmatprep.subr.mxu0 0.0
    %376 = vmatpush1.xpose.msra.mxu0 %v333
    %377 = vmatprep.subr.mxu0 0.0
    %378 = vmatpush1.xpose.msra.mxu0 %v331
    %379 = vmatprep.subr.mxu0 0.0
    %380 = vmatpush2.xpose.msra.mxu0 0.0
    %381 = vmatprep.subr.mxu0 0.0
    %382 = vmatpush2.xpose.msra.mxu0 0.0
    %383 = vmatprep.subr.mxu0 0.0
    %384 = vmatpush2.xpose.msra.mxu0 0.0
    %385 = vmatprep.subr.mxu0 0.0
    %386 = vmatpush2.xpose.msra.mxu0 0.0
    %387 = vmatprep.subr.mxu0 0.0
    %388 = vmatpush2.xpose.msra.mxu0 0.0
    %389 = vmatprep.subr.mxu0 0.0
    %390 = vmatpush2.xpose.msra.mxu0 0.0
    %391 = vmatprep.subr.mxu0 0.0
    %392 = vmatpush2.xpose.msra.mxu0 0.0
    %393 = vmatprep.subr.mxu0 0.0
    %394 = vmatpush2.xpose.msra.mxu0 0.0
    %395 = vmatprep.subr.mxu0 0.0
    %396 = vmatpush2.xpose.msra.mxu0 0.0
    %397 = vmatprep.subr.mxu0 0.0
    %398 = vmatpush2.xpose.msra.mxu0 0.0
    %399 = vmatprep.subr.mxu0 0.0
    %400 = vmatpush2.xpose.msra.mxu0 0.0
    %401 = vmatprep.subr.mxu0 0.0
    %402 = vmatpush2.xpose.msra.mxu0 0.0
    %403 = vmatprep.subr.mxu0 0.0
    %404 = vmatpush2.xpose.msra.mxu0 0.0
    %405 = vmatprep.subr.mxu0 0.0
    %406 = vmatpush2.xpose.msra.mxu0 0.0
    %407 = vmatprep.subr.mxu0 0.0
    %408 = vmatpush2.xpose.msra.mxu0 0.0
    %409 = vmatprep.subr.mxu0 0.0
    %410 = vmatpush2.xpose.msra.mxu0 0.0
    %411 = vmatprep.mubr.f32.mxu0 0.0
    %412 = vmatmul.mubr.f32.gmra.mxu0 %v315
    %v413 = vpop.f32.mrf.mxu0
    %v414 = vadd.f32 %v64, %v413
    %v415 = vpop.f32.mrf.mxu0
    %416 = vmatprep.mubr.f32.mxu0 0.0
    %417 = vmatmul.mubr.f32.gmra.mxu0 %v317
    %v418 = vpop.f32.mrf.mxu0
    %v419 = vadd.f32 %v65, %v418
    %v420 = vpop.f32.mrf.mxu0
    %421 = vmatprep.mubr.f32.mxu0 0.0
    %422 = vmatmul.mubr.f32.gmra.mxu0 %v319
    %v423 = vpop.f32.mrf.mxu0
    %v424 = vadd.f32 %v66, %v423
    %v425 = vpop.f32.mrf.mxu0
    %426 = vmatprep.mubr.f32.mxu0 0.0
    %427 = vmatmul.mubr.f32.gmra.mxu0 %v321
    %v428 = vpop.f32.mrf.mxu0
    %v429 = vadd.f32 %v67, %v428
    %v430 = vpop.f32.mrf.mxu0
    %431 = vmatprep.mubr.f32.mxu0 0.0
    %432 = vmatmul.mubr.f32.gmra.mxu0 %v323
    %v433 = vpop.f32.mrf.mxu0
    %v434 = vadd.f32 %v68, %v433
    %v435 = vpop.f32.mrf.mxu0
    %436 = vmatprep.mubr.f32.mxu0 0.0
    %437 = vmatmul.mubr.f32.gmra.mxu0 %v325
    %v438 = vpop.f32.mrf.mxu0
    %v439 = vadd.f32 %v69, %v438
    %v440 = vpop.f32.mrf.mxu0
    %441 = vmatprep.mubr.f32.mxu0 0.0
    %442 = vmatmul.mubr.f32.gmra.mxu0 %v327
    %v443 = vpop.f32.mrf.mxu0
    %v444 = vadd.f32 %v70, %v443
    %v445 = vpop.f32.mrf.mxu0
    %446 = vmatprep.mubr.f32.mxu0 0.0
    %447 = vmatmul.mubr.f32.gmra.mxu0 %v329
    %v448 = vpop.f32.mrf.mxu0
    %v449 = vadd.f32 %v71, %v448
    %v450 = vpop.f32.mrf.mxu0
    %451 = vdwg.mxu0
    %vm452 = vcmask 523264
    %v453 = vsel %vm452, %v414, -inf
    %454 = vmax.xlane.f32.xlu0 %v453
    %v455 = vpop.xlane.xlu0 %454
    %v456 = vsel %vm452, %v419, -inf
    %457 = vmax.xlane.f32.xlu0 %v456
    %v458 = vpop.xlane.xlu0 %457
    %v459 = vsel %vm452, %v424, -inf
    %460 = vmax.xlane.f32.xlu0 %v459
    %v461 = vpop.xlane.xlu0 %460
    %v462 = vsel %vm452, %v429, -inf
    %463 = vmax.xlane.f32.xlu0 %v462
    %v464 = vpop.xlane.xlu0 %463
    %v465 = vsel %vm452, %v434, -inf
    %466 = vmax.xlane.f32.xlu0 %v465
    %v467 = vpop.xlane.xlu0 %466
    %v468 = vsel %vm452, %v439, -inf
    %469 = vmax.xlane.f32.xlu0 %v468
    %v470 = vpop.xlane.xlu0 %469
    %v471 = vsel %vm452, %v444, -inf
    %472 = vmax.xlane.f32.xlu0 %v471
    %v473 = vpop.xlane.xlu0 %472
    %v474 = vsel %vm452, %v449, -inf
    %475 = vmax.xlane.f32.xlu0 %v474
    %v476 = vpop.xlane.xlu0 %475
    %v477 = vsub.f32 %v414, %v455
    %v478 = vsub.f32 %v419, %v458
    %v479 = vsub.f32 %v424, %v461
    %v480 = vsub.f32 %v429, %v464
    %v481 = vsub.f32 %v434, %v467
    %v482 = vsub.f32 %v439, %v470
    %v483 = vsub.f32 %v444, %v473
    %v484 = vsub.f32 %v449, %v476
    %v485 = vmul.f32 %v477, 1.442695
    %v486 = vpow.pop %v485
    %v487 = vmul.f32 %v478, 1.442695
    %v488 = vpow.pop %v487
    %v489 = vmul.f32 %v479, 1.442695
    %v490 = vpow.pop %v489
    %v491 = vmul.f32 %v480, 1.442695
    %v492 = vpow.pop %v491
    %v493 = vmul.f32 %v481, 1.442695
    %v494 = vpow.pop %v493
    %v495 = vmul.f32 %v482, 1.442695
    %v496 = vpow.pop %v495
    %v497 = vmul.f32 %v483, 1.442695
    %v498 = vpow.pop %v497
    %v499 = vmul.f32 %v484, 1.442695
    %v500 = vpow.pop %v499
    %v501 = vsel %vm452, %v486, 0.0
    %502 = vadd.xlane.f32.xlu0 %v501
    %v503 = vpop.xlane.xlu0 %502
    %v504 = vsel %vm452, %v488, 0.0
    %505 = vadd.xlane.f32.xlu0 %v504
    %v506 = vpop.xlane.xlu0 %505
    %v507 = vsel %vm452, %v490, 0.0
    %508 = vadd.xlane.f32.xlu0 %v507
    %v509 = vpop.xlane.xlu0 %508
    %v510 = vsel %vm452, %v492, 0.0
    %511 = vadd.xlane.f32.xlu0 %v510
    %v512 = vpop.xlane.xlu0 %511
    %v513 = vsel %vm452, %v494, 0.0
    %514 = vadd.xlane.f32.xlu0 %v513
    %v515 = vpop.xlane.xlu0 %514
    %v516 = vsel %vm452, %v496, 0.0
    %517 = vadd.xlane.f32.xlu0 %v516
    %v518 = vpop.xlane.xlu0 %517
    %v519 = vsel %vm452, %v498, 0.0
    %520 = vadd.xlane.f32.xlu0 %v519
    %v521 = vpop.xlane.xlu0 %520
    %v522 = vsel %vm452, %v500, 0.0
    %523 = vadd.xlane.f32.xlu0 %v522
    %v524 = vpop.xlane.xlu0 %523
    %v525 = vrcp.pop %v503
    %v526 = vrcp.pop %v506
    %v527 = vrcp.pop %v509
    %v528 = vrcp.pop %v512
    %v529 = vrcp.pop %v515
    %v530 = vrcp.pop %v518
    %v531 = vrcp.pop %v521
    %v532 = vrcp.pop %v524
    %v533 = vmul.f32 %v486, %v525
    %v534 = vmul.f32 %v488, %v526
    %v535 = vmul.f32 %v490, %v527
    %v536 = vmul.f32 %v492, %v528
    %v537 = vmul.f32 %v494, %v529
    %v538 = vmul.f32 %v496, %v530
    %v539 = vmul.f32 %v498, %v531
    %v540 = vmul.f32 %v500, %v532
    %541 = vrot.lane.b32.xlu0 %v282, 112
    %v542 = vpop.permute.xlu0 %541
    %543 = vrot.lane.b32.xlu0 %v283, 112
    %v544 = vpop.permute.xlu0 %543
    %545 = vrot.lane.b32.xlu0 %v284, 112
    %v546 = vpop.permute.xlu0 %545
    %547 = vrot.lane.b32.xlu0 %v285, 112
    %v548 = vpop.permute.xlu0 %547
    %549 = vrot.lane.b32.xlu0 %v286, 112
    %v550 = vpop.permute.xlu0 %549
    %551 = vrot.lane.b32.xlu0 %v287, 112
    %v552 = vpop.permute.xlu0 %551
    %553 = vrot.lane.b32.xlu0 %v288, 112
    %v554 = vpop.permute.xlu0 %553
    %555 = vrot.lane.b32.xlu0 %v289, 112
    %v556 = vpop.permute.xlu0 %555
    %v566 = vsel %vm452, %v533, 0
    %v569 = vsel %vm452, %v534, 0
    %v572 = vsel %vm452, %v535, 0
    %v575 = vsel %vm452, %v536, 0
    %v578 = vsel %vm452, %v537, 0
    %v581 = vsel %vm452, %v538, 0
    %v584 = vsel %vm452, %v539, 0
    %v587 = vsel %vm452, %v540, 0
    %589 = vmatprep.subr.mxu0 0.0
    %590 = vmatpush1.msra.mxu0 0.0
    %591 = vmatprep.subr.mxu0 0.0
    %592 = vmatpush1.msra.mxu0 0.0
    %593 = vmatprep.subr.mxu0 0.0
    %594 = vmatpush1.msra.mxu0 0.0
    %595 = vmatprep.subr.mxu0 0.0
    %596 = vmatpush1.msra.mxu0 0.0
    %597 = vmatprep.subr.mxu0 0.0
    %598 = vmatpush1.msra.mxu0 0.0
    %599 = vmatprep.subr.mxu0 0.0
    %600 = vmatpush1.msra.mxu0 0.0
    %601 = vmatprep.subr.mxu0 0.0
    %602 = vmatpush1.msra.mxu0 0.0
    %603 = vmatprep.subr.mxu0 0.0
    %604 = vmatpush1.msra.mxu0 0.0
    %605 = vmatprep.subr.mxu0 0.0
    %606 = vmatpush1.msra.mxu0 %v556
    %607 = vmatprep.subr.mxu0 0.0
    %608 = vmatpush1.msra.mxu0 %v554
    %609 = vmatprep.subr.mxu0 0.0
    %610 = vmatpush1.msra.mxu0 %v552
    %611 = vmatprep.subr.mxu0 0.0
    %612 = vmatpush1.msra.mxu0 %v550
    %613 = vmatprep.subr.mxu0 0.0
    %614 = vmatpush1.msra.mxu0 %v548
    %615 = vmatprep.subr.mxu0 0.0
    %616 = vmatpush1.msra.mxu0 %v546
    %617 = vmatprep.subr.mxu0 0.0
    %618 = vmatpush1.msra.mxu0 %v544
    %619 = vmatprep.subr.mxu0 0.0
    %620 = vmatpush1.msra.mxu0 %v542
    %621 = vmatprep.subr.mxu0 0.0
    %622 = vmatpush2.msra.mxu0 0.0
    %623 = vmatprep.subr.mxu0 0.0
    %624 = vmatpush2.msra.mxu0 0.0
    %625 = vmatprep.subr.mxu0 0.0
    %626 = vmatpush2.msra.mxu0 0.0
    %627 = vmatprep.subr.mxu0 0.0
    %628 = vmatpush2.msra.mxu0 0.0
    %629 = vmatprep.subr.mxu0 0.0
    %630 = vmatpush2.msra.mxu0 0.0
    %631 = vmatprep.subr.mxu0 0.0
    %632 = vmatpush2.msra.mxu0 0.0
    %633 = vmatprep.subr.mxu0 0.0
    %634 = vmatpush2.msra.mxu0 0.0
    %635 = vmatprep.subr.mxu0 0.0
    %636 = vmatpush2.msra.mxu0 0.0
    %637 = vmatprep.subr.mxu0 0.0
    %638 = vmatpush2.msra.mxu0 0.0
    %639 = vmatprep.subr.mxu0 0.0
    %640 = vmatpush2.msra.mxu0 0.0
    %641 = vmatprep.subr.mxu0 0.0
    %642 = vmatpush2.msra.mxu0 0.0
    %643 = vmatprep.subr.mxu0 0.0
    %644 = vmatpush2.msra.mxu0 0.0
    %645 = vmatprep.subr.mxu0 0.0
    %646 = vmatpush2.msra.mxu0 0.0
    %647 = vmatprep.subr.mxu0 0.0
    %648 = vmatpush2.msra.mxu0 0.0
    %649 = vmatprep.subr.mxu0 0.0
    %650 = vmatpush2.msra.mxu0 0.0
    %651 = vmatprep.subr.mxu0 0.0
    %652 = vmatpush2.msra.mxu0 0.0
    %653 = vmatprep.mubr.f32.mxu0 0.0
    %654 = vmatmul.mubr.f32.gmra.mxu0 %v566
    %v655 = vpop.f32.mrf.mxu0
    %v656 = vadd.f32 0.0, %v655
    %v657 = vpop.f32.mrf.mxu0
    %658 = vmatprep.mubr.f32.mxu0 0.0
    %659 = vmatmul.mubr.f32.gmra.mxu0 %v569
    %v660 = vpop.f32.mrf.mxu0
    %v661 = vadd.f32 0.0, %v660
    %v662 = vpop.f32.mrf.mxu0
    %663 = vmatprep.mubr.f32.mxu0 0.0
    %664 = vmatmul.mubr.f32.gmra.mxu0 %v572
    %v665 = vpop.f32.mrf.mxu0
    %v666 = vadd.f32 0.0, %v665
    %v667 = vpop.f32.mrf.mxu0
    %668 = vmatprep.mubr.f32.mxu0 0.0
    %669 = vmatmul.mubr.f32.gmra.mxu0 %v575
    %v670 = vpop.f32.mrf.mxu0
    %v671 = vadd.f32 0.0, %v670
    %v672 = vpop.f32.mrf.mxu0
    %673 = vmatprep.mubr.f32.mxu0 0.0
    %674 = vmatmul.mubr.f32.gmra.mxu0 %v578
    %v675 = vpop.f32.mrf.mxu0
    %v676 = vadd.f32 0.0, %v675
    %v677 = vpop.f32.mrf.mxu0
    %678 = vmatprep.mubr.f32.mxu0 0.0
    %679 = vmatmul.mubr.f32.gmra.mxu0 %v581
    %v680 = vpop.f32.mrf.mxu0
    %v681 = vadd.f32 0.0, %v680
    %v682 = vpop.f32.mrf.mxu0
    %683 = vmatprep.mubr.f32.mxu0 0.0
    %684 = vmatmul.mubr.f32.gmra.mxu0 %v584
    %v685 = vpop.f32.mrf.mxu0
    %v686 = vadd.f32 0.0, %v685
    %v687 = vpop.f32.mrf.mxu0
    %688 = vmatprep.mubr.f32.mxu0 0.0
    %689 = vmatmul.mubr.f32.gmra.mxu0 %v587
    %v690 = vpop.f32.mrf.mxu0
    %v691 = vadd.f32 0.0, %v690
    %v692 = vpop.f32.mrf.mxu0
    %693 = vdwg.mxu0
    %694 = vst.msk [vmem:[#allocation3] sm:$0xff] %vm314, %v656
    %695 = vst.msk [vmem:[#allocation3 + $0x8] sm:$0xff] %vm314, %v661
    %696 = vst.msk [vmem:[#allocation3 + $0x10] sm:$0xff] %vm314, %v666
    %697 = vst.msk [vmem:[#allocation3 + $0x18] sm:$0xff] %vm314, %v671
    %698 = vst.msk [vmem:[#allocation3 + $0x20] sm:$0xff] %vm314, %v676
    %699 = vst.msk [vmem:[#allocation3 + $0x28] sm:$0xff] %vm314, %v681
    %700 = vst.msk [vmem:[#allocation3 + $0x30] sm:$0xff] %vm314, %v686
    %701 = vst.msk [vmem:[#allocation3 + $0x38] sm:$0xff] %vm314, %v691
    %v702 = vld [vmem:[#allocation3] ss:$4 sm:$0xff]
    %s703 = scalar_lea.vmem [#allocation3], 32
    %v704 = vld [vmem:[%s703] ss:$4 sm:$0xff]
    %s705 = scalar_lea.vmem [#allocation3], 1
    %v706 = vld [vmem:[%s705] ss:$4 sm:$0xff]
    %s707 = scalar_lea.vmem [#allocation3], 33
    %v708 = vld [vmem:[%s707] ss:$4 sm:$0xff]
    %s709 = scalar_lea.vmem [#allocation3], 2
    %v710 = vld [vmem:[%s709] ss:$4 sm:$0xff]
    %s711 = scalar_lea.vmem [#allocation3], 34
    %v712 = vld [vmem:[%s711] ss:$4 sm:$0xff]
    %s713 = scalar_lea.vmem [#allocation3], 3
    %v714 = vld [vmem:[%s713] ss:$4 sm:$0xff]
    %s715 = scalar_lea.vmem [#allocation3], 35
    %v716 = vld [vmem:[%s715] ss:$4 sm:$0xff]
    %719 = vrot.lane.b32.xlu0 %v706, 8
    %v720 = vpop.permute.xlu0 %719
    %721 = vrot.lane.b32.xlu0 %v708, 8
    %v722 = vpop.permute.xlu0 %721
    %727 = vrot.lane.b32.xlu0 %v710, 16
    %v728 = vpop.permute.xlu0 %727
    %729 = vrot.lane.b32.xlu0 %v712, 16
    %v730 = vpop.permute.xlu0 %729
    %735 = vrot.lane.b32.xlu0 %v714, 24
    %v736 = vpop.permute.xlu0 %735
    %737 = vrot.lane.b32.xlu0 %v716, 24
    %v738 = vpop.permute.xlu0 %737
    %v741 = vsel %vm314, %v702, %v720
    %v742 = vsel %vm314, %v704, %v722
    %v743 = vsel %vm85, %v741, %v728
    %v744 = vsel %vm85, %v742, %v730
    %v745 = vsel %vm253, %v743, %v736
    %v746 = vsel %vm253, %v744, %v738
    %v747 = vlaneseq
    %v748 = vshrl.u32 %v747, 7
    %v749 = vsub.s32 0, %v748
    %v750 = vrot.slane %v74, %v749
    %v752 = vsel %vm171, %v745, 0
    %v755 = vsel %vm171, %v746, 0
    %757 = vmatprep.subr.mxu0 0.0
    %758 = vmatpush1.msra.mxu0 0.0
    %759 = vmatprep.subr.mxu0 0.0
    %760 = vmatpush1.msra.mxu0 0.0
    %761 = vmatprep.subr.mxu0 0.0
    %762 = vmatpush1.msra.mxu0 0.0
    %763 = vmatprep.subr.mxu0 0.0
    %764 = vmatpush1.msra.mxu0 0.0
    %765 = vmatprep.subr.mxu0 0.0
    %766 = vmatpush1.msra.mxu0 0.0
    %767 = vmatprep.subr.mxu0 0.0
    %768 = vmatpush1.msra.mxu0 0.0
    %769 = vmatprep.subr.mxu0 0.0
    %770 = vmatpush1.msra.mxu0 0.0
    %771 = vmatprep.subr.mxu0 0.0
    %772 = vmatpush1.msra.mxu0 0.0
    %773 = vmatprep.subr.mxu0 0.0
    %774 = vmatpush1.msra.mxu0 0.0
    %775 = vmatprep.subr.mxu0 0.0
    %776 = vmatpush1.msra.mxu0 0.0
    %777 = vmatprep.subr.mxu0 0.0
    %778 = vmatpush1.msra.mxu0 0.0
    %779 = vmatprep.subr.mxu0 0.0
    %780 = vmatpush1.msra.mxu0 0.0
    %781 = vmatprep.subr.mxu0 0.0
    %782 = vmatpush1.msra.mxu0 %v51
    %783 = vmatprep.subr.mxu0 0.0
    %784 = vmatpush1.msra.mxu0 %v50
    %785 = vmatprep.subr.mxu0 0.0
    %786 = vmatpush1.msra.mxu0 %v49
    %787 = vmatprep.subr.mxu0 0.0
    %788 = vmatpush1.msra.mxu0 %v48
    %789 = vmatprep.subr.mxu0 0.0
    %790 = vmatpush2.msra.mxu0 0.0
    %791 = vmatprep.subr.mxu0 0.0
    %792 = vmatpush2.msra.mxu0 0.0
    %793 = vmatprep.subr.mxu0 0.0
    %794 = vmatpush2.msra.mxu0 0.0
    %795 = vmatprep.subr.mxu0 0.0
    %796 = vmatpush2.msra.mxu0 0.0
    %797 = vmatprep.subr.mxu0 0.0
    %798 = vmatpush2.msra.mxu0 0.0
    %799 = vmatprep.subr.mxu0 0.0
    %800 = vmatpush2.msra.mxu0 0.0
    %801 = vmatprep.subr.mxu0 0.0
    %802 = vmatpush2.msra.mxu0 0.0
    %803 = vmatprep.subr.mxu0 0.0
    %804 = vmatpush2.msra.mxu0 0.0
    %805 = vmatprep.subr.mxu0 0.0
    %806 = vmatpush2.msra.mxu0 0.0
    %807 = vmatprep.subr.mxu0 0.0
    %808 = vmatpush2.msra.mxu0 0.0
    %809 = vmatprep.subr.mxu0 0.0
    %810 = vmatpush2.msra.mxu0 0.0
    %811 = vmatprep.subr.mxu0 0.0
    %812 = vmatpush2.msra.mxu0 0.0
    %813 = vmatprep.subr.mxu0 0.0
    %814 = vmatpush2.msra.mxu0 0.0
    %815 = vmatprep.subr.mxu0 0.0
    %816 = vmatpush2.msra.mxu0 0.0
    %817 = vmatprep.subr.mxu0 0.0
    %818 = vmatpush2.msra.mxu0 0.0
    %819 = vmatprep.subr.mxu0 0.0
    %820 = vmatpush2.msra.mxu0 0.0
    %821 = vmatprep.mubr.f32.mxu0 0.0
    %822 = vmatmul.mubr.f32.gmra.mxu0 %v752
    %v823 = vpop.f32.mrf.mxu0
    %v824 = vadd.f32 %v750, %v823
    %v825 = vpop.f32.mrf.mxu0
    %826 = vmatprep.mubr.f32.mxu0 0.0
    %827 = vmatmul.mubr.f32.gmra.mxu0 %v755
    %v828 = vpop.f32.mrf.mxu0
    %v829 = vadd.f32 %v750, %v828
    %v830 = vpop.f32.mrf.mxu0
    %831 = vdwg.mxu0
    %v832 = vadd.f32 %v824, %v159
    %v833 = vadd.f32 %v829, %v164
    %v834 = vsel %vm171, %v832, 0.0
    %835 = vadd.xlane.f32.xlu0 %v834
    %v836 = vpop.xlane.xlu0 %835
    %v837 = vsel %vm171, %v833, 0.0
    %838 = vadd.xlane.f32.xlu0 %v837
    %v839 = vpop.xlane.xlu0 %838
    %v840 = vrcp.pop 32.0
    %v841 = vmul.f32 %v836, %v840
    %v842 = vmul.f32 %v839, %v840
    %v843 = vsub.f32 %v832, %v841
    %v844 = vsub.f32 %v833, %v842
    %v845 = vmul.f32 %v843, %v843
    %v846 = vmul.f32 %v844, %v844
    %v847 = vsel %vm171, %v845, 0.0
    %848 = vadd.xlane.f32.xlu0 %v847
    %v849 = vpop.xlane.xlu0 %848
    %v850 = vsel %vm171, %v846, 0.0
    %851 = vadd.xlane.f32.xlu0 %v850
    %v852 = vpop.xlane.xlu0 %851
    %v853 = vmul.f32 %v849, %v840
    %v854 = vmul.f32 %v852, %v840
    %v855 = vadd.f32 %v853, 1e-05
    %v856 = vadd.f32 %v854, 1e-05
    %v857 = vrsqrt.pop %v855
    %v858 = vrsqrt.pop %v856
    %v859 = vmul.f32 %v843, %v857
    %v860 = vmul.f32 %v844, %v858
    %v861 = vlaneseq
    %v862 = vshrl.u32 %v861, 7
    %v863 = vsub.s32 0, %v862
    %v864 = vrot.slane %v75, %v863
    %v865 = vmul.f32 %v864, %v859
    %v866 = vmul.f32 %v864, %v860
    %v867 = vlaneseq
    %v868 = vshrl.u32 %v867, 7
    %v869 = vsub.s32 0, %v868
    %v870 = vrot.slane %v76, %v869
    %v871 = vadd.f32 %v865, %v870
    %v872 = vadd.f32 %v866, %v870
    %v873 = vlaneseq
    %v874 = vshrl.u32 %v873, 7
    %v875 = vsub.s32 0, %v874
    %v876 = vrot.slane %v77, %v875
    %v878 = vsel %vm171, %v871, 0
    %v881 = vsel %vm171, %v872, 0
    %883 = vmatprep.subr.mxu0 0.0
    %884 = vmatpush1.msra.mxu0 0.0
    %885 = vmatprep.subr.mxu0 0.0
    %886 = vmatpush1.msra.mxu0 0.0
    %887 = vmatprep.subr.mxu0 0.0
    %888 = vmatpush1.msra.mxu0 0.0
    %889 = vmatprep.subr.mxu0 0.0
    %890 = vmatpush1.msra.mxu0 0.0
    %891 = vmatprep.subr.mxu0 0.0
    %892 = vmatpush1.msra.mxu0 0.0
    %893 = vmatprep.subr.mxu0 0.0
    %894 = vmatpush1.msra.mxu0 0.0
    %895 = vmatprep.subr.mxu0 0.0
    %896 = vmatpush1.msra.mxu0 0.0
    %897 = vmatprep.subr.mxu0 0.0
    %898 = vmatpush1.msra.mxu0 0.0
    %899 = vmatprep.subr.mxu0 0.0
    %900 = vmatpush1.msra.mxu0 0.0
    %901 = vmatprep.subr.mxu0 0.0
    %902 = vmatpush1.msra.mxu0 0.0
    %903 = vmatprep.subr.mxu0 0.0
    %904 = vmatpush1.msra.mxu0 0.0
    %905 = vmatprep.subr.mxu0 0.0
    %906 = vmatpush1.msra.mxu0 0.0
    %907 = vmatprep.subr.mxu0 0.0
    %908 = vmatpush1.msra.mxu0 %v55
    %909 = vmatprep.subr.mxu0 0.0
    %910 = vmatpush1.msra.mxu0 %v54
    %911 = vmatprep.subr.mxu0 0.0
    %912 = vmatpush1.msra.mxu0 %v53
    %913 = vmatprep.subr.mxu0 0.0
    %914 = vmatpush1.msra.mxu0 %v52
    %915 = vmatprep.subr.mxu0 0.0
    %916 = vmatpush2.msra.mxu0 0.0
    %917 = vmatprep.subr.mxu0 0.0
    %918 = vmatpush2.msra.mxu0 0.0
    %919 = vmatprep.subr.mxu0 0.0
    %920 = vmatpush2.msra.mxu0 0.0
    %921 = vmatprep.subr.mxu0 0.0
    %922 = vmatpush2.msra.mxu0 0.0
    %923 = vmatprep.subr.mxu0 0.0
    %924 = vmatpush2.msra.mxu0 0.0
    %925 = vmatprep.subr.mxu0 0.0
    %926 = vmatpush2.msra.mxu0 0.0
    %927 = vmatprep.subr.mxu0 0.0
    %928 = vmatpush2.msra.mxu0 0.0
    %929 = vmatprep.subr.mxu0 0.0
    %930 = vmatpush2.msra.mxu0 0.0
    %931 = vmatprep.subr.mxu0 0.0
    %932 = vmatpush2.msra.mxu0 0.0
    %933 = vmatprep.subr.mxu0 0.0
    %934 = vmatpush2.msra.mxu0 0.0
    %935 = vmatprep.subr.mxu0 0.0
    %936 = vmatpush2.msra.mxu0 0.0
    %937 = vmatprep.subr.mxu0 0.0
    %938 = vmatpush2.msra.mxu0 0.0
    %939 = vmatprep.subr.mxu0 0.0
    %940 = vmatpush2.msra.mxu0 0.0
    %941 = vmatprep.subr.mxu0 0.0
    %942 = vmatpush2.msra.mxu0 0.0
    %943 = vmatprep.subr.mxu0 0.0
    %944 = vmatpush2.msra.mxu0 0.0
    %945 = vmatprep.subr.mxu0 0.0
    %946 = vmatpush2.msra.mxu0 0.0
    %947 = vmatprep.mubr.f32.mxu0 0.0
    %948 = vmatmul.mubr.f32.gmra.mxu0 %v878
    %v949 = vpop.f32.mrf.mxu0
    %v950 = vadd.f32 %v876, %v949
    %v951 = vpop.f32.mrf.mxu0
    %952 = vmatprep.mubr.f32.mxu0 0.0
    %953 = vmatmul.mubr.f32.gmra.mxu0 %v881
    %v954 = vpop.f32.mrf.mxu0
    %v955 = vadd.f32 %v876, %v954
    %v956 = vpop.f32.mrf.mxu0
    %957 = vdwg.mxu0
    %v958 = vmax.f32 %v950, 0.0
    %v959 = vmax.f32 %v955, 0.0
    %v960 = vlaneseq
    %v961 = vshrl.u32 %v960, 7
    %v962 = vsub.s32 0, %v961
    %v963 = vrot.slane %v78, %v962
    %v965 = vsel %vm452, %v958, 0
    %v968 = vsel %vm452, %v959, 0
    %970 = vmatprep.subr.mxu0 0.0
    %971 = vmatpush1.msra.mxu0 0.0
    %972 = vmatprep.subr.mxu0 0.0
    %973 = vmatpush1.msra.mxu0 0.0
    %974 = vmatprep.subr.mxu0 0.0
    %975 = vmatpush1.msra.mxu0 0.0
    %976 = vmatprep.subr.mxu0 0.0
    %977 = vmatpush1.msra.mxu0 0.0
    %978 = vmatprep.subr.mxu0 0.0
    %979 = vmatpush1.msra.mxu0 0.0
    %980 = vmatprep.subr.mxu0 0.0
    %981 = vmatpush1.msra.mxu0 0.0
    %982 = vmatprep.subr.mxu0 0.0
    %983 = vmatpush1.msra.mxu0 0.0
    %984 = vmatprep.subr.mxu0 0.0
    %985 = vmatpush1.msra.mxu0 0.0
    %986 = vmatprep.subr.mxu0 0.0
    %987 = vmatpush1.msra.mxu0 %v63
    %988 = vmatprep.subr.mxu0 0.0
    %989 = vmatpush1.msra.mxu0 %v62
    %990 = vmatprep.subr.mxu0 0.0
    %991 = vmatpush1.msra.mxu0 %v61
    %992 = vmatprep.subr.mxu0 0.0
    %993 = vmatpush1.msra.mxu0 %v60
    %994 = vmatprep.subr.mxu0 0.0
    %995 = vmatpush1.msra.mxu0 %v59
    %996 = vmatprep.subr.mxu0 0.0
    %997 = vmatpush1.msra.mxu0 %v58
    %998 = vmatprep.subr.mxu0 0.0
    %999 = vmatpush1.msra.mxu0 %v57
    %1000 = vmatprep.subr.mxu0 0.0
    %1001 = vmatpush1.msra.mxu0 %v56
    %1002 = vmatprep.subr.mxu0 0.0
    %1003 = vmatpush2.msra.mxu0 0.0
    %1004 = vmatprep.subr.mxu0 0.0
    %1005 = vmatpush2.msra.mxu0 0.0
    %1006 = vmatprep.subr.mxu0 0.0
    %1007 = vmatpush2.msra.mxu0 0.0
    %1008 = vmatprep.subr.mxu0 0.0
    %1009 = vmatpush2.msra.mxu0 0.0
    %1010 = vmatprep.subr.mxu0 0.0
    %1011 = vmatpush2.msra.mxu0 0.0
    %1012 = vmatprep.subr.mxu0 0.0
    %1013 = vmatpush2.msra.mxu0 0.0
    %1014 = vmatprep.subr.mxu0 0.0
    %1015 = vmatpush2.msra.mxu0 0.0
    %1016 = vmatprep.subr.mxu0 0.0
    %1017 = vmatpush2.msra.mxu0 0.0
    %1018 = vmatprep.subr.mxu0 0.0
    %1019 = vmatpush2.msra.mxu0 0.0
    %1020 = vmatprep.subr.mxu0 0.0
    %1021 = vmatpush2.msra.mxu0 0.0
    %1022 = vmatprep.subr.mxu0 0.0
    %1023 = vmatpush2.msra.mxu0 0.0
    %1024 = vmatprep.subr.mxu0 0.0
    %1025 = vmatpush2.msra.mxu0 0.0
    %1026 = vmatprep.subr.mxu0 0.0
    %1027 = vmatpush2.msra.mxu0 0.0
    %1028 = vmatprep.subr.mxu0 0.0
    %1029 = vmatpush2.msra.mxu0 0.0
    %1030 = vmatprep.subr.mxu0 0.0
    %1031 = vmatpush2.msra.mxu0 0.0
    %1032 = vmatprep.subr.mxu0 0.0
    %1033 = vmatpush2.msra.mxu0 0.0
    %1034 = vmatprep.mubr.f32.mxu0 0.0
    %1035 = vmatmul.mubr.f32.gmra.mxu0 %v965
    %v1036 = vpop.f32.mrf.mxu0
    %v1037 = vadd.f32 %v963, %v1036
    %v1038 = vpop.f32.mrf.mxu0
    %1039 = vmatprep.mubr.f32.mxu0 0.0
    %1040 = vmatmul.mubr.f32.gmra.mxu0 %v968
    %v1041 = vpop.f32.mrf.mxu0
    %v1042 = vadd.f32 %v963, %v1041
    %v1043 = vpop.f32.mrf.mxu0
    %1044 = vdwg.mxu0
    %v1045 = vadd.f32 %v1037, %v871
    %v1046 = vadd.f32 %v1042, %v872
    %v1047 = vsel %vm171, %v1045, 0.0
    %1048 = vadd.xlane.f32.xlu0 %v1047
    %v1049 = vpop.xlane.xlu0 %1048
    %v1050 = vsel %vm171, %v1046, 0.0
    %1051 = vadd.xlane.f32.xlu0 %v1050
    %v1052 = vpop.xlane.xlu0 %1051
    %v1053 = vmul.f32 %v1049, %v840
    %v1054 = vmul.f32 %v1052, %v840
    %v1055 = vsub.f32 %v1045, %v1053
    %v1056 = vsub.f32 %v1046, %v1054
    %v1057 = vmul.f32 %v1055, %v1055
    %v1058 = vmul.f32 %v1056, %v1056
    %v1059 = vsel %vm171, %v1057, 0.0
    %1060 = vadd.xlane.f32.xlu0 %v1059
    %v1061 = vpop.xlane.xlu0 %1060
    %v1062 = vsel %vm171, %v1058, 0.0
    %1063 = vadd.xlane.f32.xlu0 %v1062
    %v1064 = vpop.xlane.xlu0 %1063
    %v1065 = vmul.f32 %v1061, %v840
    %v1066 = vmul.f32 %v1064, %v840
    %v1067 = vadd.f32 %v1065, 1e-05
    %v1068 = vadd.f32 %v1066, 1e-05
    %v1069 = vrsqrt.pop %v1067
    %v1070 = vrsqrt.pop %v1068
    %v1071 = vmul.f32 %v1055, %v1069
    %v1072 = vmul.f32 %v1056, %v1070
    %v1073 = vlaneseq
    %v1074 = vshrl.u32 %v1073, 7
    %v1075 = vsub.s32 0, %v1074
    %v1076 = vrot.slane %v79, %v1075
    %v1077 = vmul.f32 %v1076, %v1071
    %v1078 = vmul.f32 %v1076, %v1072
    %v1079 = vlaneseq
    %v1080 = vshrl.u32 %v1079, 7
    %v1081 = vsub.s32 0, %v1080
    %v1082 = vrot.slane %v80, %v1081
    %v1083 = vadd.f32 %v1077, %v1082
    %v1084 = vadd.f32 %v1078, %v1082
    %1085 = vst.msk [vmem:[#allocation9] sm:$0xff] %vm171, %v1083
    %1086 = vst.msk [vmem:[#allocation9 + $0x8] sm:$0xff] %vm171, %v1084
    // Predicated region
    $region18: #{encoder_layer.1} parent=1 // pred_check
      _
    $region19: #{encoder_layer.1} parent=1 // pred_check_branch
      %1088 = sbr.rel (0) target = $region21
    $region20: #{encoder_layer.1} parent=1 // pred_region
      %s1090 = ssub.s32 256, 256
      %1091 = vsyncadd [#allocation6], %s1090
      %s1092 = sshll.u32 [#allocation9], 4
      %s1093 = int_to_ptr.vmem [resolvable:$true] %s1092
      %1098 = dma.vmem_to_hbm [thread:$0]  %s1093, 256, %s2, [#allocation6], 128, 128, 8
    $region21: #{encoder_layer.1} parent=1 // pred_fallthru
      _
    // Predicated region
    $region22: #{encoder_layer.1} parent=1 // pred_check
      _
    $region23: #{encoder_layer.1} parent=1 // pred_check_branch
      %1100 = sbr.rel (0) target = $region25
    $region24: #{encoder_layer.1} parent=1 // pred_region
      %1101 = dma.done [#allocation6], 256
    $region25: #{encoder_layer.1} parent=1 // pred_fallthru
      _
    %1102 = vsyncpa [#allocation5], 1
    %1103 = vsyncpa [#allocation8], 1
    %1104 = vsyncpa [#allocation6], 1

</llo_original>
